<compile_context>
chip_gen: v7x
topology: tpu7x:2x2x1
jax: 0.10.0
libtpu: 0.0.40
codegen_flags: <defaults>
</compile_context>

<pallas_src>
import functools

import jax
import jax.numpy as jnp
from jax.experimental import pallas as pl
from jax.experimental.pallas import tpu as pltpu


def _dysep_kernel(q_ref, v_ref, w_ref, b_ref, g_ref, beta_ref, o_ref,
                  *, N, H, K, eps):
    # q_ref/v_ref/o_ref : (1, N, H)   one batch element per grid step
    # w_ref : (H, N+K)   Linear weight (transposed), columns = [point-mix | depth]
    # b_ref : (1, N+K)   Linear bias, same column order
    # g_ref/beta_ref : (1, H)  LayerNorm gamma / beta
    f32 = jnp.float32
    q = q_ref[0].astype(f32)                   # (N, H)
    v = v_ref[0].astype(f32)                   # (N, H)

    # Fused dynamic-weight generation: ONE f32 MXU matmul (tiny; keeps parity
    # with the PyTorch f32 Linear).
    dy = jnp.dot(q, w_ref[...], preferred_element_type=f32) + b_ref[...]
    pw = dy[:, :N]                             # (N, N) point-mix, lane-aligned

    # Depthwise 'same' conv over H + ReLU.  Tap j uses value shifted by
    # d = j - pad along H; the shift is v @ S_d with S_d[h', h] = (h' == h + d),
    # which also zero-pads out-of-range positions exactly like padding='same'.
    pad = (K - 1) // 2
    src = jax.lax.broadcasted_iota(jnp.int32, (H, H), 0)
    dst = jax.lax.broadcasted_iota(jnp.int32, (H, H), 1)
    acc = jnp.zeros((N, H), f32)
    for j in range(K):                         # K is small & static -> unrolled
        d = j - pad
        if d == 0:
            shifted = v
        else:
            shift_mat = (src == dst + d).astype(f32)       # banded 0/1 (H, H)
            shifted = jnp.dot(v, shift_mat, preferred_element_type=f32)
        tap = dy[:, N + j:N + j + 1]           # (N, 1) per-proposal depth tap
        acc = acc + tap * shifted
    depth = jnp.maximum(acc, 0.0)

    # Pointwise conv for this batch: (N,N)@(N,H) matmul, bf16 operands, f32 acc.
    point = jnp.dot(pw.astype(jnp.bfloat16), depth.astype(jnp.bfloat16),
                    preferred_element_type=f32)

    # LayerNorm over the hidden dim (f32, biased variance, nn.LayerNorm eps).
    mean = jnp.mean(point, axis=-1, keepdims=True)
    var = jnp.mean(jnp.square(point - mean), axis=-1, keepdims=True)
    y = (point - mean) * jax.lax.rsqrt(var + eps)
    o_ref[0] = (y * g_ref[...] + beta_ref[...]).astype(o_ref.dtype)


@functools.partial(jax.jit, static_argnames=("kernel_size", "eps"))
def dysep_conv_atten(query, value, wl, bl, gamma, beta, *, kernel_size, eps=1e-5):
    """DySepConvAtten forward.  wl is the nn.Linear weight transposed: (H, N+K)."""
    B, N, H = query.shape
    K = kernel_size
    assert K % 2 == 1, "padding='same' implemented for odd kernel sizes"
    # TODO(synk): even K with PyTorch's asymmetric 'same' padding not handled.

    # Static re-ordering of the Linear columns to [point-mix | depth taps] so the
    # MXU-bound pw slice inside the kernel is the lane-aligned prefix.  Constant
    # per model -> hoisted / fused by XLA under jit.
    w_cat = jnp.concatenate([wl[:, K:], wl[:, :K]], axis=1)          # (H, N+K)
    b_cat = jnp.concatenate([bl[K:], bl[:K]]).reshape(1, N + K)      # (1, N+K)
    gamma2 = gamma.reshape(1, H)
    beta2 = beta.reshape(1, H)

    kernel = functools.partial(_dysep_kernel, N=N, H=H, K=K, eps=eps)
    return pl.pallas_call(
        kernel,
        out_shape=jax.ShapeDtypeStruct((B, N, H), query.dtype),
        grid=(B,),                                   # one batch per grid step
        in_specs=[
            pl.BlockSpec((1, N, H), lambda b: (b, 0, 0)),    # query[b]
            pl.BlockSpec((1, N, H), lambda b: (b, 0, 0)),    # value[b]
            pl.BlockSpec((H, N + K), lambda b: (0, 0)),      # Linear W (resident)
            pl.BlockSpec((1, N + K), lambda b: (0, 0)),      # Linear b (resident)
            pl.BlockSpec((1, H), lambda b: (0, 0)),          # LN gamma (resident)
            pl.BlockSpec((1, H), lambda b: (0, 0)),          # LN beta  (resident)
        ],
        out_specs=pl.BlockSpec((1, N, H), lambda b: (b, 0, 0)),
        compiler_params=pltpu.CompilerParams(
            dimension_semantics=("parallel",)),      # v7x: 2 TCs split the batch
    )(query, value, w_cat, b_cat, gamma2, beta2)


def dysep_conv_atten_reference(query, value, wl, bl, gamma, beta, *,
                               kernel_size, eps=1e-5):
    """Pure-JAX f32 reference matching the PyTorch DySepConvAtten forward."""
    B, N, H = query.shape
    K = kernel_size
    pad = (K - 1) // 2
    hi = jax.lax.Precision.HIGHEST
    dy = jnp.einsum('bnh,hm->bnm', query, wl, precision=hi) + bl   # (B, N, N+K)
    dw = dy[..., :K]                                               # (B, N, K)
    pw = dy[..., K:]                                               # (B, N, N)
    vpad = jnp.pad(value, ((0, 0), (0, 0), (pad, pad)))
    depth = jnp.zeros((B, N, H), jnp.float32)
    for j in range(K):
        depth = depth + dw[..., j:j + 1] * vpad[:, :, j:j + H]
    depth = jax.nn.relu(depth)
    point = jnp.einsum('bon,bnh->boh', pw, depth, precision=hi)
    mean = point.mean(-1, keepdims=True)
    var = ((point - mean) ** 2).mean(-1, keepdims=True)
    return (point - mean) / jnp.sqrt(var + eps) * gamma + beta


if __name__ == "__main__":
    # Small deterministic config (cfg.MODEL.UISE.*):
    #   HIDDEN_DIM = 32, NUM_PROPOSALS = 8, CONV_KERNEL_SIZE_1D = 3
    B, N, H, K = 2, 8, 32, 3

    key = jax.random.PRNGKey(0)
    k_q, k_v, k_w, k_b = jax.random.split(key, 4)
    query = jax.random.normal(k_q, (B, N, H), jnp.float32)
    value = jax.random.normal(k_v, (B, N, H), jnp.float32)
    # nn.Linear(H, N+K): weight (N+K, H), bias (N+K,) -> store weight transposed.
    wl = jax.random.normal(k_w, (H, N + K), jnp.float32) * (1.0 / jnp.sqrt(H))
    bl = jax.random.normal(k_b, (N + K,), jnp.float32) * 0.02
    gamma = jnp.ones((H,), jnp.float32)   # nn.LayerNorm default init
    beta = jnp.zeros((H,), jnp.float32)

    out = dysep_conv_atten(query, value, wl, bl, gamma, beta, kernel_size=K)
    out = jax.block_until_ready(out)

    ref = dysep_conv_atten_reference(query, value, wl, bl, gamma, beta,
                                     kernel_size=K)
    assert out.shape == (B, N, H)
    # The only bf16 rounding is the (N,N)@(N,H) point matmul (f32 accumulation);
    # weight generation, depthwise conv and LayerNorm are f32, so the tolerance
    # tightens vs. the previous all-bf16 version.
    err = float(jnp.max(jnp.abs(out - ref)))
    assert jnp.allclose(out, ref, atol=3e-2, rtol=3e-2), f"max abs err {err}"
    print("KERNEL_OK")
</pallas_src>

<mosaic_0001>
module attributes {stable_mosaic.version = 11 : i64} {
  func.func @_dysep_kernel(%arg0: i32, %arg1: memref<1x8x32xf32, #tpu.memory_space<vmem>>, %arg2: memref<1x8x32xf32, #tpu.memory_space<vmem>>, %arg3: memref<32x11xf32, #tpu.memory_space<vmem>>, %arg4: memref<1x11xf32, #tpu.memory_space<vmem>>, %arg5: memref<1x32xf32, #tpu.memory_space<vmem>>, %arg6: memref<1x32xf32, #tpu.memory_space<vmem>>, %arg7: memref<1x8x32xf32, #tpu.memory_space<vmem>>) attributes {dimension_semantics = [#tpu.dimension_semantics<parallel>], iteration_bounds = array<i64: 2>, scalar_prefetch = 0 : i64, scratch_operands = 0 : i64, tpu.core_type = #tpu.core_type<tc>, window_params = [{transform_indices = @transform_0, window_bounds = array<i64: 1, 8, 32>}, {transform_indices = @transform_1, window_bounds = array<i64: 1, 8, 32>}, {pipeline_mode = #tpu.pipeline_mode<synchronous>, transform_indices = @transform_2, window_bounds = array<i64: 32, 11>}, {pipeline_mode = #tpu.pipeline_mode<synchronous>, transform_indices = @transform_3, window_bounds = array<i64: 1, 11>}, {pipeline_mode = #tpu.pipeline_mode<synchronous>, transform_indices = @transform_4, window_bounds = array<i64: 1, 32>}, {pipeline_mode = #tpu.pipeline_mode<synchronous>, transform_indices = @transform_5, window_bounds = array<i64: 1, 32>}, {transform_indices = @transform_6, window_bounds = array<i64: 1, 8, 32>}]} {
    %c0 = arith.constant 0 : index
    %c0_0 = arith.constant 0 : index
    %c0_1 = arith.constant 0 : index
    %0 = vector.load %arg1[%c0, %c0_0, %c0_1] : memref<1x8x32xf32, #tpu.memory_space<vmem>>, vector<1x8x32xf32>
    %1 = vector.shape_cast %0 : vector<1x8x32xf32> to vector<8x32xf32>
    %c0_2 = arith.constant 0 : index
    %c0_3 = arith.constant 0 : index
    %c0_4 = arith.constant 0 : index
    %2 = vector.load %arg2[%c0_2, %c0_3, %c0_4] : memref<1x8x32xf32, #tpu.memory_space<vmem>>, vector<1x8x32xf32>
    %3 = vector.shape_cast %2 : vector<1x8x32xf32> to vector<8x32xf32>
    %c0_5 = arith.constant 0 : index
    %c0_6 = arith.constant 0 : index
    %4 = vector.load %arg3[%c0_5, %c0_6] : memref<32x11xf32, #tpu.memory_space<vmem>>, vector<32x11xf32>
    %cst = arith.constant dense<0.000000e+00> : vector<8x11xf32>
    %5 = tpu.matmul %1, %4, %cst {dimension_numbers = #tpu.dot_dimension_numbers<[1], [0], [0], [1], [0, 0, 1, 1], [], []>} : vector<8x32xf32>, vector<32x11xf32>, vector<8x11xf32> -> vector<8x11xf32>
    %c0_7 = arith.constant 0 : index
    %c0_8 = arith.constant 0 : index
    %6 = vector.load %arg4[%c0_7, %c0_8] : memref<1x11xf32, #tpu.memory_space<vmem>>, vector<1x11xf32>
    %7 = vector.broadcast %6 : vector<1x11xf32> to vector<8x11xf32>
    %8 = arith.addf %5, %7 : vector<8x11xf32>
    %9 = vector.extract_strided_slice %8 {offsets = [0, 0], sizes = [8, 8], strides = [1, 1]} : vector<8x11xf32> to vector<8x8xf32>
    %10 = tpu.iota {dimensions = array<i32: 0>} : vector<32x32xi32>
    %11 = tpu.iota {dimensions = array<i32: 1>} : vector<32x32xi32>
    %cst_9 = arith.constant 0.000000e+00 : f32
    %12 = vector.broadcast %cst_9 : f32 to vector<8x32xf32>
    %c-1_i32 = arith.constant -1 : i32
    %13 = vector.broadcast %c-1_i32 : i32 to vector<32x32xi32>
    %14 = arith.addi %11, %13 : vector<32x32xi32>
    %15 = arith.cmpi eq, %10, %14 : vector<32x32xi32>
    %16 = arith.extui %15 : vector<32x32xi1> to vector<32x32xi32>
    %17 = arith.sitofp %16 : vector<32x32xi32> to vector<32x32xf32>
    %cst_10 = arith.constant dense<0.000000e+00> : vector<8x32xf32>
    %18 = tpu.matmul %3, %17, %cst_10 {dimension_numbers = #tpu.dot_dimension_numbers<[1], [0], [0], [1], [0, 0, 1, 1], [], []>} : vector<8x32xf32>, vector<32x32xf32>, vector<8x32xf32> -> vector<8x32xf32>
    %19 = vector.extract_strided_slice %8 {offsets = [0, 8], sizes = [8, 1], strides = [1, 1]} : vector<8x11xf32> to vector<8x1xf32>
    %20 = vector.broadcast %19 : vector<8x1xf32> to vector<8x32xf32>
    %21 = arith.mulf %20, %18 : vector<8x32xf32>
    %22 = arith.addf %12, %21 : vector<8x32xf32>
    %23 = vector.extract_strided_slice %8 {offsets = [0, 9], sizes = [8, 1], strides = [1, 1]} : vector<8x11xf32> to vector<8x1xf32>
    %24 = vector.broadcast %23 : vector<8x1xf32> to vector<8x32xf32>
    %25 = arith.mulf %24, %3 : vector<8x32xf32>
    %26 = arith.addf %22, %25 : vector<8x32xf32>
    %c1_i32 = arith.constant 1 : i32
    %27 = vector.broadcast %c1_i32 : i32 to vector<32x32xi32>
    %28 = arith.addi %11, %27 : vector<32x32xi32>
    %29 = arith.cmpi eq, %10, %28 : vector<32x32xi32>
    %30 = arith.extui %29 : vector<32x32xi1> to vector<32x32xi32>
    %31 = arith.sitofp %30 : vector<32x32xi32> to vector<32x32xf32>
    %cst_11 = arith.constant dense<0.000000e+00> : vector<8x32xf32>
    %32 = tpu.matmul %3, %31, %cst_11 {dimension_numbers = #tpu.dot_dimension_numbers<[1], [0], [0], [1], [0, 0, 1, 1], [], []>} : vector<8x32xf32>, vector<32x32xf32>, vector<8x32xf32> -> vector<8x32xf32>
    %33 = vector.extract_strided_slice %8 {offsets = [0, 10], sizes = [8, 1], strides = [1, 1]} : vector<8x11xf32> to vector<8x1xf32>
    %34 = vector.broadcast %33 : vector<8x1xf32> to vector<8x32xf32>
    %35 = arith.mulf %34, %32 : vector<8x32xf32>
    %36 = arith.addf %26, %35 : vector<8x32xf32>
    %cst_12 = arith.constant 0.000000e+00 : f32
    %37 = vector.broadcast %cst_12 : f32 to vector<8x32xf32>
    %38 = arith.maximumf %36, %37 : vector<8x32xf32>
    %39 = arith.truncf %9 : vector<8x8xf32> to vector<8x8xbf16>
    %40 = arith.truncf %38 : vector<8x32xf32> to vector<8x32xbf16>
    %cst_13 = arith.constant dense<0.000000e+00> : vector<8x32xf32>
    %41 = tpu.matmul %39, %40, %cst_13 {dimension_numbers = #tpu.dot_dimension_numbers<[1], [0], [0], [1], [0, 0, 1, 1], [], []>} : vector<8x8xbf16>, vector<8x32xbf16>, vector<8x32xf32> -> vector<8x32xf32>
    %cst_14 = arith.constant dense<0.000000e+00> : vector<8xf32>
    %42 = vector.multi_reduction <add>, %41, %cst_14 [1] : vector<8x32xf32> to vector<8xf32>
    %43 = vector.shape_cast %42 : vector<8xf32> to vector<8x1xf32>
    %cst_15 = arith.constant 3.200000e+01 : f32
    %44 = vector.broadcast %cst_15 : f32 to vector<8x1xf32>
    %45 = arith.divf %43, %44 : vector<8x1xf32>
    %46 = vector.broadcast %45 : vector<8x1xf32> to vector<8x32xf32>
    %47 = arith.subf %41, %46 : vector<8x32xf32>
    %48 = arith.mulf %47, %47 : vector<8x32xf32>
    %cst_16 = arith.constant dense<0.000000e+00> : vector<8xf32>
    %49 = vector.multi_reduction <add>, %48, %cst_16 [1] : vector<8x32xf32> to vector<8xf32>
    %50 = vector.shape_cast %49 : vector<8xf32> to vector<8x1xf32>
    %cst_17 = arith.constant 3.200000e+01 : f32
    %51 = vector.broadcast %cst_17 : f32 to vector<8x1xf32>
    %52 = arith.divf %50, %51 : vector<8x1xf32>
    %53 = vector.broadcast %45 : vector<8x1xf32> to vector<8x32xf32>
    %54 = arith.subf %41, %53 : vector<8x32xf32>
    %cst_18 = arith.constant 9.99999974E-6 : f32
    %55 = vector.broadcast %cst_18 : f32 to vector<8x1xf32>
    %56 = arith.addf %52, %55 : vector<8x1xf32>
    %57 = math.rsqrt %56 : vector<8x1xf32>
    %58 = vector.broadcast %57 : vector<8x1xf32> to vector<8x32xf32>
    %59 = arith.mulf %54, %58 : vector<8x32xf32>
    %c0_19 = arith.constant 0 : index
    %c0_20 = arith.constant 0 : index
    %60 = vector.load %arg5[%c0_19, %c0_20] : memref<1x32xf32, #tpu.memory_space<vmem>>, vector<1x32xf32>
    %61 = vector.broadcast %60 : vector<1x32xf32> to vector<8x32xf32>
    %62 = arith.mulf %59, %61 : vector<8x32xf32>
    %c0_21 = arith.constant 0 : index
    %c0_22 = arith.constant 0 : index
    %63 = vector.load %arg6[%c0_21, %c0_22] : memref<1x32xf32, #tpu.memory_space<vmem>>, vector<1x32xf32>
    %64 = vector.broadcast %63 : vector<1x32xf32> to vector<8x32xf32>
    %65 = arith.addf %62, %64 : vector<8x32xf32>
    %c0_23 = arith.constant 0 : index
    %c0_24 = arith.constant 0 : index
    %c0_25 = arith.constant 0 : index
    %66 = vector.load %arg7[%c0_23, %c0_24, %c0_25] : memref<1x8x32xf32, #tpu.memory_space<vmem>>, vector<1x8x32xf32>
    %67 = vector.shape_cast %66 : vector<1x8x32xf32> to vector<8x32xf32>
    %68 = vector.shape_cast %65 : vector<8x32xf32> to vector<1x8x32xf32>
    tpu.vector_store %arg7[%c0_23, %c0_24, %c0_25], %68 {strides = array<i32>} : memref<1x8x32xf32, #tpu.memory_space<vmem>>, vector<1x8x32xf32>,
    return
  }
  func.func @transform_0(%arg0: i32) -> (i32, i32, i32) {
    %c0_i32 = arith.constant 0 : i32
    %c0_i32_0 = arith.constant 0 : i32
    %c0_i32_1 = arith.constant 0 : i32
    return %arg0, %c0_i32, %c0_i32_0 : i32, i32, i32
  }
  func.func @transform_1(%arg0: i32) -> (i32, i32, i32) {
    %c0_i32 = arith.constant 0 : i32
    %c0_i32_0 = arith.constant 0 : i32
    %c0_i32_1 = arith.constant 0 : i32
    return %arg0, %c0_i32, %c0_i32_0 : i32, i32, i32
  }
  func.func @transform_2(%arg0: i32) -> (i32, i32) {
    %c0_i32 = arith.constant 0 : i32
    %c0_i32_0 = arith.constant 0 : i32
    %c0_i32_1 = arith.constant 0 : i32
    return %c0_i32, %c0_i32_0 : i32, i32
  }
  func.func @transform_3(%arg0: i32) -> (i32, i32) {
    %c0_i32 = arith.constant 0 : i32
    %c0_i32_0 = arith.constant 0 : i32
    %c0_i32_1 = arith.constant 0 : i32
    return %c0_i32, %c0_i32_0 : i32, i32
  }
  func.func @transform_4(%arg0: i32) -> (i32, i32) {
    %c0_i32 = arith.constant 0 : i32
    %c0_i32_0 = arith.constant 0 : i32
    %c0_i32_1 = arith.constant 0 : i32
    return %c0_i32, %c0_i32_0 : i32, i32
  }
  func.func @transform_5(%arg0: i32) -> (i32, i32) {
    %c0_i32 = arith.constant 0 : i32
    %c0_i32_0 = arith.constant 0 : i32
    %c0_i32_1 = arith.constant 0 : i32
    return %c0_i32, %c0_i32_0 : i32, i32
  }
  func.func @transform_6(%arg0: i32) -> (i32, i32, i32) {
    %c0_i32 = arith.constant 0 : i32
    %c0_i32_0 = arith.constant 0 : i32
    %c0_i32_1 = arith.constant 0 : i32
    return %arg0, %c0_i32, %c0_i32_0 : i32, i32, i32
  }
}

</mosaic_0001>

<llo_original>
// kernel: dysep_conv_atten.1
$region0: #{dysep_conv_atten.1}
  #allocation0 [shape = 'u32[]', space=smem, size = 0x4, offset = 0x4, fixed_abs, tag = 'smem constant byte address 0x4 - core index']
  #allocation1 [shape = 'u32[144,128]{1,0:T(1,128)}', space=vmem, size = 0x12000, scoped, tag = 'internal scratch']
  %s0 = inlined_call_operand.vmem [shape: f32[2,8,32], index: 0, kind: input, shape index: {}]
  %s1 = inlined_call_operand.vmem [shape: f32[2,8,32], index: 1, kind: input, shape index: {}]
  %s2 = inlined_call_operand.vmem [shape: f32[32,11], index: 2, kind: input, shape index: {}]
  %s3 = inlined_call_operand.vmem [shape: f32[1,11], index: 3, kind: input, shape index: {}]
  %s4 = inlined_call_operand.vmem [shape: f32[1,32], index: 4, kind: input, shape index: {}]
  %s5 = inlined_call_operand.vmem [shape: f32[1,32], index: 5, kind: input, shape index: {}]
  %s6 = inlined_call_operand.hbm [shape: f32[2,8,32], index: 6, kind: output, shape index: {}]
  %s7 = sld [smem:[#allocation0]]
  $region57: #{dysep_conv_atten.1} parent=0
    _
  %s9 = ssub.s32 1, %s7
  %s10 = scalar_select 0, %s9, %s7
  $region1: #{dysep_conv_atten.1} parent=0
    #allocation2 [shape = 'u8[8192]{0}', space=vmem, size = 0x2000, scoped, tag = 'output window, operand 0']
    #allocation3 [shape = 's32[2]{0}', space=sflag, size = 0x8, scoped, tag = 'scoped memory for dysep_conv_atten.1']
    %11 = vsyncpa [#allocation3], 0
    %s12 = scalar_lea.sflag [#allocation3], 1
    %13 = vsyncpa %s12, 0
    loop: start=0, step=1, limit=4
    $region2: #{dysep_conv_atten.1} parent=1 // loop_pre_header
      _
    $region3: #{dysep_conv_atten.1} parent=1 // loop_header
      %s15 = sphi 0, %s19
      %p16 = scmp.ge.s32.totalorder %s15, 4
      %s25 = sphi 0, %s27
      %s28 = sphi 0, %s25
      %s29 = sphi 0, %s28
      %s45 = sphi 0, %s29
      %s51 = sphi 0, %s53
      %s54 = sphi 0, %s51
      %s55 = sphi 0, %s54
      %s71 = sphi 0, %s55
      %s75 = sphi 0, %s75
      %s77 = sphi 0, %s75
      %s78 = sphi 0, %s77
      %s92 = sphi 0, %s78
      %s96 = sphi 0, %s96
      %s98 = sphi 0, %s96
      %s99 = sphi 0, %s98
      %s113 = sphi 0, %s99
      %s117 = sphi 0, %s117
      %s119 = sphi 0, %s117
      %s120 = sphi 0, %s119
      %s134 = sphi 0, %s120
      %s138 = sphi 0, %s138
      %s140 = sphi 0, %s138
      %s141 = sphi 0, %s140
      %s155 = sphi 0, %s141
      %s161 = sphi 0, %s163
      %s164 = sphi 0, %s161
      %s165 = sphi 0, %s164
      %s181 = sphi 0, %s165
    $region4: #{dysep_conv_atten.1} parent=1 // loop_header_branch
      %18 = sbr.rel (%p16) target = $region8
    $region5: #{dysep_conv_atten.1} parent=1 // loop_body
      %s20 = ssub.s32 %s15, 1
      %s21 = ssub.s32 %s15, 2
      %s22 = sadd.s32 %s15, 1
      %s23 = ssub.s32 %s15, %s22
      %p24 = scmp.eq.s32.totalorder %s23, 0
      %s26 = sadd.s32 %s25, 1
      %s27 = scalar_select %p24, %s25, %s26
      %p30 = pneg %p24
      %p31 = scmp.eq.s32.totalorder %s15, 1
      %p32 = por %p30, %p31
      %p33 = scmp.ne.s32.totalorder %s25, %s28
      %p34 = scmp.eq.s32.totalorder %s15, 0
      %p35 = por %p33, %p34
      %p36 = scmp.ne.s32.totalorder %s25, %s28
      %p37 = scmp.eq.s32.totalorder %s20, 1
      %p38 = por %p36, %p37
      %p39 = scmp.ne.s32.totalorder %s28, %s29
      %p40 = scmp.eq.s32.totalorder %s20, 0
      %p41 = por %p39, %p40
      %p42 = scmp.ne.s32.totalorder %s28, %s29
      %p43 = scmp.eq.s32.totalorder %s21, 1
      %p44 = por %p42, %p43
      %p46 = scmp.ne.s32.totalorder %s29, %s45
      %p47 = scmp.eq.s32.totalorder %s21, 0
      %p48 = por %p46, %p47
      %s49 = ssub.s32 %s15, %s22
      %p50 = scmp.eq.s32.totalorder %s49, 0
      %s52 = sadd.s32 %s51, 1
      %s53 = scalar_select %p50, %s51, %s52
      %p56 = pneg %p50
      %p57 = scmp.eq.s32.totalorder %s15, 1
      %p58 = por %p56, %p57
      %p59 = scmp.ne.s32.totalorder %s51, %s54
      %p60 = scmp.eq.s32.totalorder %s15, 0
      %p61 = por %p59, %p60
      %p62 = scmp.ne.s32.totalorder %s51, %s54
      %p63 = scmp.eq.s32.totalorder %s20, 1
      %p64 = por %p62, %p63
      %p65 = scmp.ne.s32.totalorder %s54, %s55
      %p66 = scmp.eq.s32.totalorder %s20, 0
      %p67 = por %p65, %p66
      %p68 = scmp.ne.s32.totalorder %s54, %s55
      %p69 = scmp.eq.s32.totalorder %s21, 1
      %p70 = por %p68, %p69
      %p72 = scmp.ne.s32.totalorder %s55, %s71
      %p73 = scmp.eq.s32.totalorder %s21, 0
      %p74 = por %p72, %p73
      %s76 = sadd.s32 %s75, 1
      %p79 = scmp.eq.s32.totalorder %s15, 1
      %p80 = scmp.ne.s32.totalorder %s75, %s77
      %p81 = scmp.eq.s32.totalorder %s15, 0
      %p82 = por %p80, %p81
      %p83 = scmp.ne.s32.totalorder %s75, %s77
      %p84 = scmp.eq.s32.totalorder %s20, 1
      %p85 = por %p83, %p84
      %p86 = scmp.ne.s32.totalorder %s77, %s78
      %p87 = scmp.eq.s32.totalorder %s20, 0
      %p88 = por %p86, %p87
      %p89 = scmp.ne.s32.totalorder %s77, %s78
      %p90 = scmp.eq.s32.totalorder %s21, 1
      %p91 = por %p89, %p90
      %p93 = scmp.ne.s32.totalorder %s78, %s92
      %p94 = scmp.eq.s32.totalorder %s21, 0
      %p95 = por %p93, %p94
      %s97 = sadd.s32 %s96, 1
      %p100 = scmp.eq.s32.totalorder %s15, 1
      %p101 = scmp.ne.s32.totalorder %s96, %s98
      %p102 = scmp.eq.s32.totalorder %s15, 0
      %p103 = por %p101, %p102
      %p104 = scmp.ne.s32.totalorder %s96, %s98
      %p105 = scmp.eq.s32.totalorder %s20, 1
      %p106 = por %p104, %p105
      %p107 = scmp.ne.s32.totalorder %s98, %s99
      %p108 = scmp.eq.s32.totalorder %s20, 0
      %p109 = por %p107, %p108
      %p110 = scmp.ne.s32.totalorder %s98, %s99
      %p111 = scmp.eq.s32.totalorder %s21, 1
      %p112 = por %p110, %p111
      %p114 = scmp.ne.s32.totalorder %s99, %s113
      %p115 = scmp.eq.s32.totalorder %s21, 0
      %p116 = por %p114, %p115
      %s118 = sadd.s32 %s117, 1
      %p121 = scmp.eq.s32.totalorder %s15, 1
      %p122 = scmp.ne.s32.totalorder %s117, %s119
      %p123 = scmp.eq.s32.totalorder %s15, 0
      %p124 = por %p122, %p123
      %p125 = scmp.ne.s32.totalorder %s117, %s119
      %p126 = scmp.eq.s32.totalorder %s20, 1
      %p127 = por %p125, %p126
      %p128 = scmp.ne.s32.totalorder %s119, %s120
      %p129 = scmp.eq.s32.totalorder %s20, 0
      %p130 = por %p128, %p129
      %p131 = scmp.ne.s32.totalorder %s119, %s120
      %p132 = scmp.eq.s32.totalorder %s21, 1
      %p133 = por %p131, %p132
      %p135 = scmp.ne.s32.totalorder %s120, %s134
      %p136 = scmp.eq.s32.totalorder %s21, 0
      %p137 = por %p135, %p136
      %s139 = sadd.s32 %s138, 1
      %p142 = scmp.eq.s32.totalorder %s15, 1
      %p143 = scmp.ne.s32.totalorder %s138, %s140
      %p144 = scmp.eq.s32.totalorder %s15, 0
      %p145 = por %p143, %p144
      %p146 = scmp.ne.s32.totalorder %s138, %s140
      %p147 = scmp.eq.s32.totalorder %s20, 1
      %p148 = por %p146, %p147
      %p149 = scmp.ne.s32.totalorder %s140, %s141
      %p150 = scmp.eq.s32.totalorder %s20, 0
      %p151 = por %p149, %p150
      %p152 = scmp.ne.s32.totalorder %s140, %s141
      %p153 = scmp.eq.s32.totalorder %s21, 1
      %p154 = por %p152, %p153
      %p156 = scmp.ne.s32.totalorder %s141, %s155
      %p157 = scmp.eq.s32.totalorder %s21, 0
      %p158 = por %p156, %p157
      %s159 = ssub.s32 %s15, %s22
      %p160 = scmp.eq.s32.totalorder %s159, 0
      %s162 = sadd.s32 %s161, 1
      %s163 = scalar_select %p160, %s161, %s162
      %p166 = pneg %p160
      %p167 = scmp.eq.s32.totalorder %s15, 1
      %p168 = por %p166, %p167
      %p169 = scmp.ne.s32.totalorder %s161, %s164
      %p170 = scmp.eq.s32.totalorder %s15, 0
      %p171 = por %p169, %p170
      %p172 = scmp.ne.s32.totalorder %s161, %s164
      %p173 = scmp.eq.s32.totalorder %s20, 1
      %p174 = por %p172, %p173
      %p175 = scmp.ne.s32.totalorder %s164, %s165
      %p176 = scmp.eq.s32.totalorder %s20, 0
      %p177 = por %p175, %p176
      %p178 = scmp.ne.s32.totalorder %s164, %s165
      %p179 = scmp.eq.s32.totalorder %s21, 1
      %p180 = por %p178, %p179
      %p182 = scmp.ne.s32.totalorder %s165, %s181
      %p183 = scmp.eq.s32.totalorder %s21, 0
      %p184 = por %p182, %p183
      %p185 = scmp.le.s32.totalorder 1, %s15
      %p186 = scmp.lt.s32.totalorder %s15, 3
      %p187 = pnand %p185, %p186
      %p188 = pneg %p187
      // Predicated region
      $region9: #{dysep_conv_atten.1} parent=5 // pred_check
        _
      $region10: #{dysep_conv_atten.1} parent=5 // pred_check_branch
        %190 = sbr.rel (%p187) target = $region12
      $region11: #{dysep_conv_atten.1} parent=5 // pred_region
        %s191 = ssub.s32 %s15, 1
        // Predicated region
        $region13: #{dysep_conv_atten.1} parent=11 // pred_check
          %p192 = pneg %p88
        $region14: #{dysep_conv_atten.1} parent=11 // pred_check_branch
          %194 = sbr.rel (%p192) target = $region16
        $region15: #{dysep_conv_atten.1} parent=11 // pred_region
          _
        $region16: #{dysep_conv_atten.1} parent=11 // pred_fallthru
          _
        // Predicated region
        $region17: #{dysep_conv_atten.1} parent=11 // pred_check
          %p195 = pneg %p109
        $region18: #{dysep_conv_atten.1} parent=11 // pred_check_branch
          %197 = sbr.rel (%p195) target = $region20
        $region19: #{dysep_conv_atten.1} parent=11 // pred_region
          _
        $region20: #{dysep_conv_atten.1} parent=11 // pred_fallthru
          _
        // Predicated region
        $region21: #{dysep_conv_atten.1} parent=11 // pred_check
          %p198 = pneg %p130
        $region22: #{dysep_conv_atten.1} parent=11 // pred_check_branch
          %200 = sbr.rel (%p198) target = $region24
        $region23: #{dysep_conv_atten.1} parent=11 // pred_region
          _
        $region24: #{dysep_conv_atten.1} parent=11 // pred_fallthru
          _
        // Predicated region
        $region25: #{dysep_conv_atten.1} parent=11 // pred_check
          %p201 = pneg %p151
        $region26: #{dysep_conv_atten.1} parent=11 // pred_check_branch
          %203 = sbr.rel (%p201) target = $region28
        $region27: #{dysep_conv_atten.1} parent=11 // pred_region
          _
        $region28: #{dysep_conv_atten.1} parent=11 // pred_fallthru
          _
      $region12: #{dysep_conv_atten.1} parent=5 // pred_fallthru
        _
      %p204 = scmp.lt.s32.totalorder %s15, 2
      // Predicated region
      $region29: #{dysep_conv_atten.1} parent=5 // pred_check
        %p205 = pneg %p204
      $region30: #{dysep_conv_atten.1} parent=5 // pred_check_branch
        %207 = sbr.rel (%p205) target = $region32
      $region31: #{dysep_conv_atten.1} parent=5 // pred_region
        // Predicated region
        $region33: #{dysep_conv_atten.1} parent=31 // pred_check
          %p208 = pneg %p35
        $region34: #{dysep_conv_atten.1} parent=31 // pred_check_branch
          %210 = sbr.rel (%p208) target = $region36
        $region35: #{dysep_conv_atten.1} parent=31 // pred_region
          %p211 = scmp.lt.s32.totalorder %s15, 1
          %s212 = scalar_select %p211, %s15, 1
          %s213 = smul.addr %s212, 8
          %s214 = scalar_lea.vmem %s0, %s213
        $region36: #{dysep_conv_atten.1} parent=31 // pred_fallthru
          _
        // Predicated region
        $region37: #{dysep_conv_atten.1} parent=31 // pred_check
          %p215 = pneg %p61
        $region38: #{dysep_conv_atten.1} parent=31 // pred_check_branch
          %217 = sbr.rel (%p215) target = $region40
        $region39: #{dysep_conv_atten.1} parent=31 // pred_region
          %p218 = scmp.lt.s32.totalorder %s15, 1
          %s219 = scalar_select %p218, %s15, 1
          %s220 = smul.addr %s219, 8
          %s221 = scalar_lea.vmem %s1, %s220
        $region40: #{dysep_conv_atten.1} parent=31 // pred_fallthru
          _
      $region32: #{dysep_conv_atten.1} parent=5 // pred_fallthru
        _
      %p222 = scmp.le.s32.totalorder 1, %s15
      %p223 = scmp.lt.s32.totalorder %s15, 3
      %p224 = pnand %p222, %p223
      %p225 = pneg %p224
      // Predicated region
      $region41: #{dysep_conv_atten.1} parent=5 // pred_check
        _
      $region42: #{dysep_conv_atten.1} parent=5 // pred_check_branch
        %227 = sbr.rel (%p224) target = $region44
      $region43: #{dysep_conv_atten.1} parent=5 // pred_region
        %s228 = ssub.s32 %s15, 1
        %p229 = scmp.lt.s32.totalorder %s20, 1
        %s230 = scalar_select %p229, %s20, 1
        %s231 = smul.addr %s230, 8
        %s232 = scalar_lea.vmem %s0, %s231
        %p233 = pneg %p41
        %p234 = pneg %p38
        %p235 = scmp.lt.s32.totalorder %s20, 1
        %s236 = scalar_select %p235, %s20, 1
        %s237 = smul.addr %s236, 8
        %s238 = scalar_lea.vmem %s1, %s237
        %p239 = pneg %p67
        %p240 = pneg %p64
        %p241 = pneg %p88
        %p242 = pneg %p85
        %p243 = pneg %p109
        %p244 = pneg %p106
        %p245 = pneg %p130
        %p246 = pneg %p127
        %p247 = pneg %p151
        %p248 = pneg %p148
        %p249 = pneg %p177
        %p250 = pneg %p174
        %s251 = sand.u32 %s164, 1
        %s252 = scalar_lea.sflag [#allocation3], %s251
        %s253 = sand.u32 %s164, 1
        %s254 = smul.addr %s253, 8
        %s255 = scalar_lea.vmem [#allocation2], %s254
        %p256 = scmp.lt.s32.totalorder %s20, 1
        %s257 = scalar_select %p256, %s20, 1
        %s258 = smul.addr %s257, 8
        %s259 = scalar_lea.vmem %s0, %s258
        %p260 = scmp.lt.s32.totalorder %s20, 1
        %s261 = scalar_select %p260, %s20, 1
        %s262 = smul.addr %s261, 8
        %s263 = scalar_lea.vmem %s1, %s262
        %v265 = vld [vmem:[%s259] sm:$0xff]
        %v266 = vld [vmem:[%s263] sm:$0xff]
        %v267 = vld [vmem:[%s2] sm:$0xff]
        %v268 = vld [vmem:[%s2 + $0x8] sm:$0xff]
        %v269 = vld [vmem:[%s2 + $0x10] sm:$0xff]
        %v270 = vld [vmem:[%s2 + $0x18] sm:$0xff]
        %v271 = vld [vmem:[%s3] sm:$0x1]
        %v273 = vlaneseq
        %v274 = vshrl.u32 %v273, 7
        %v275 = vsub.s32 0, %v274
        %v276 = vrot.slane %v271, %v275
        %vm278 = vcmask 261120
        %v280 = vsel %vm278, %v265, 0
        %282 = vmatprep.subr.mxu0 0.0
        %283 = vmatpush1.msra.mxu0 %v267
        %284 = vmatprep.subr.mxu0 0.0
        %285 = vmatpush1.msra.mxu0 %v268
        %286 = vmatprep.subr.mxu0 0.0
        %287 = vmatpush1.msra.mxu0 %v269
        %288 = vmatprep.subr.mxu0 0.0
        %289 = vmatpush1.msra.mxu0 %v270
        %290 = vmatprep.subr.mxu0 0.0
        %291 = vmatpush1.msra.mxu0 0.0
        %292 = vmatprep.subr.mxu0 0.0
        %293 = vmatpush1.msra.mxu0 0.0
        %294 = vmatprep.subr.mxu0 0.0
        %295 = vmatpush1.msra.mxu0 0.0
        %296 = vmatprep.subr.mxu0 0.0
        %297 = vmatpush1.msra.mxu0 0.0
        %298 = vmatprep.subr.mxu0 0.0
        %299 = vmatpush1.msra.mxu0 0.0
        %300 = vmatprep.subr.mxu0 0.0
        %301 = vmatpush1.msra.mxu0 0.0
        %302 = vmatprep.subr.mxu0 0.0
        %303 = vmatpush1.msra.mxu0 0.0
        %304 = vmatprep.subr.mxu0 0.0
        %305 = vmatpush1.msra.mxu0 0.0
        %306 = vmatprep.subr.mxu0 0.0
        %307 = vmatpush1.msra.mxu0 0.0
        %308 = vmatprep.subr.mxu0 0.0
        %309 = vmatpush1.msra.mxu0 0.0
        %310 = vmatprep.subr.mxu0 0.0
        %311 = vmatpush1.msra.mxu0 0.0
        %312 = vmatprep.subr.mxu0 0.0
        %313 = vmatpush1.msra.mxu0 0.0
        %314 = vmatprep.subr.mxu0 0.0
        %315 = vmatpush1.msra.mxu0 0.0
        %316 = vmatprep.subr.mxu0 0.0
        %317 = vmatpush1.msra.mxu0 0.0
        %318 = vmatprep.subr.mxu0 0.0
        %319 = vmatpush1.msra.mxu0 0.0
        %320 = vmatprep.subr.mxu0 0.0
        %321 = vmatpush1.msra.mxu0 0.0
        %322 = vmatprep.subr.mxu0 0.0
        %323 = vmatpush1.msra.mxu0 0.0
        %324 = vmatprep.subr.mxu0 0.0
        %325 = vmatpush1.msra.mxu0 0.0
        %326 = vmatprep.subr.mxu0 0.0
        %327 = vmatpush1.msra.mxu0 0.0
        %328 = vmatprep.subr.mxu0 0.0
        %329 = vmatpush1.msra.mxu0 0.0
        %330 = vmatprep.subr.mxu0 0.0
        %331 = vmatpush1.msra.mxu0 0.0
        %332 = vmatprep.subr.mxu0 0.0
        %333 = vmatpush1.msra.mxu0 0.0
        %334 = vmatprep.subr.mxu0 0.0
        %335 = vmatpush1.msra.mxu0 0.0
        %336 = vmatprep.subr.mxu0 0.0
        %337 = vmatpush1.msra.mxu0 0.0
        %338 = vmatprep.subr.mxu0 0.0
        %339 = vmatpush1.msra.mxu0 0.0
        %340 = vmatprep.subr.mxu0 0.0
        %341 = vmatpush1.msra.mxu0 0.0
        %342 = vmatprep.subr.mxu0 0.0
        %343 = vmatpush1.msra.mxu0 0.0
        %344 = vmatprep.subr.mxu0 0.0
        %345 = vmatpush1.msra.mxu0 0.0
        %346 = vmatprep.mubr.f32.mxu0 0.0
        %347 = vmatmul.mubr.f32.gmra.mrb[0].mxu0 %v280
        %v348 = vpop.f32.mrb[0].mxu0
        %v349 = vadd.f32 %v276, %v348
        %v350 = vpop.f32.mrb[0].mxu0
        %351 = vdwg.mxu0
        %v352 = vlaneseq
        %v353 = vshrl.u32 %v352, 7
        %v354 = vadd.s32 %v353, 8
        %v355 = vadd.s32 %v353, 16
        %v356 = vadd.s32 %v353, 24
        %v357 = vlaneseq
        %v358 = vand.u32 %v357, 127
        %v359 = vadd.s32 %v358, 4294967295
        %vm360 = vcmp.eq.s32.totalorder %v353, %v359
        %vm361 = vcmp.eq.s32.totalorder %v354, %v359
        %vm362 = vcmp.eq.s32.totalorder %v355, %v359
        %vm363 = vcmp.eq.s32.totalorder %v356, %v359
        %v364 = vsel %vm360, 1, 0
        %v365 = vsel %vm361, 1, 0
        %v366 = vsel %vm362, 1, 0
        %v367 = vsel %vm363, 1, 0
        %v368 = vcvt.s32.f32 %v364
        %v369 = vcvt.s32.f32 %v365
        %v370 = vcvt.s32.f32 %v366
        %v371 = vcvt.s32.f32 %v367
        %v373 = vsel %vm278, %v266, 0
        %375 = vmatprep.subr.mxu0 0.0
        %376 = vmatpush1.msra.mxu0 %v368
        %377 = vmatprep.subr.mxu0 0.0
        %378 = vmatpush1.msra.mxu0 %v369
        %379 = vmatprep.subr.mxu0 0.0
        %380 = vmatpush1.msra.mxu0 %v370
        %381 = vmatprep.subr.mxu0 0.0
        %382 = vmatpush1.msra.mxu0 %v371
        %383 = vmatprep.subr.mxu0 0.0
        %384 = vmatpush1.msra.mxu0 0.0
        %385 = vmatprep.subr.mxu0 0.0
        %386 = vmatpush1.msra.mxu0 0.0
        %387 = vmatprep.subr.mxu0 0.0
        %388 = vmatpush1.msra.mxu0 0.0
        %389 = vmatprep.subr.mxu0 0.0
        %390 = vmatpush1.msra.mxu0 0.0
        %391 = vmatprep.subr.mxu0 0.0
        %392 = vmatpush1.msra.mxu0 0.0
        %393 = vmatprep.subr.mxu0 0.0
        %394 = vmatpush1.msra.mxu0 0.0
        %395 = vmatprep.subr.mxu0 0.0
        %396 = vmatpush1.msra.mxu0 0.0
        %397 = vmatprep.subr.mxu0 0.0
        %398 = vmatpush1.msra.mxu0 0.0
        %399 = vmatprep.subr.mxu0 0.0
        %400 = vmatpush1.msra.mxu0 0.0
        %401 = vmatprep.subr.mxu0 0.0
        %402 = vmatpush1.msra.mxu0 0.0
        %403 = vmatprep.subr.mxu0 0.0
        %404 = vmatpush1.msra.mxu0 0.0
        %405 = vmatprep.subr.mxu0 0.0
        %406 = vmatpush1.msra.mxu0 0.0
        %407 = vmatprep.subr.mxu0 0.0
        %408 = vmatpush1.msra.mxu0 0.0
        %409 = vmatprep.subr.mxu0 0.0
        %410 = vmatpush1.msra.mxu0 0.0
        %411 = vmatprep.subr.mxu0 0.0
        %412 = vmatpush1.msra.mxu0 0.0
        %413 = vmatprep.subr.mxu0 0.0
        %414 = vmatpush1.msra.mxu0 0.0
        %415 = vmatprep.subr.mxu0 0.0
        %416 = vmatpush1.msra.mxu0 0.0
        %417 = vmatprep.subr.mxu0 0.0
        %418 = vmatpush1.msra.mxu0 0.0
        %419 = vmatprep.subr.mxu0 0.0
        %420 = vmatpush1.msra.mxu0 0.0
        %421 = vmatprep.subr.mxu0 0.0
        %422 = vmatpush1.msra.mxu0 0.0
        %423 = vmatprep.subr.mxu0 0.0
        %424 = vmatpush1.msra.mxu0 0.0
        %425 = vmatprep.subr.mxu0 0.0
        %426 = vmatpush1.msra.mxu0 0.0
        %427 = vmatprep.subr.mxu0 0.0
        %428 = vmatpush1.msra.mxu0 0.0
        %429 = vmatprep.subr.mxu0 0.0
        %430 = vmatpush1.msra.mxu0 0.0
        %431 = vmatprep.subr.mxu0 0.0
        %432 = vmatpush1.msra.mxu0 0.0
        %433 = vmatprep.subr.mxu0 0.0
        %434 = vmatpush1.msra.mxu0 0.0
        %435 = vmatprep.subr.mxu0 0.0
        %436 = vmatpush1.msra.mxu0 0.0
        %437 = vmatprep.subr.mxu0 0.0
        %438 = vmatpush1.msra.mxu0 0.0
        %439 = vmatprep.mubr.f32.mxu0 0.0
        %440 = vmatmul.mubr.f32.gmra.mrb[0].mxu0 %v373
        %v441 = vpop.f32.mrb[0].mxu0
        %v442 = vadd.f32 0.0, %v441
        %v443 = vpop.f32.mrb[0].mxu0
        %444 = vdwg.mxu0
        %446 = vset.pattern.permute.xlu0 8
        %447 = vperm.xlu0 %446, %v349
        %v448 = vpop.permute.xlu0 %447
        %v450 = vmul.f32 %v448, %v442
        %v451 = vadd.f32 %v450, 0.0
        %452 = vset.pattern.permute.xlu0 9
        %453 = vperm.xlu0 %452, %v349
        %v454 = vpop.permute.xlu0 %453
        %v456 = vmul.f32 %v454, %v266
        %v457 = vadd.f32 %v451, %v456
        %v458 = vadd.s32 %v358, 1
        %vm459 = vcmp.eq.s32.totalorder %v353, %v458
        %vm460 = vcmp.eq.s32.totalorder %v354, %v458
        %vm461 = vcmp.eq.s32.totalorder %v355, %v458
        %vm462 = vcmp.eq.s32.totalorder %v356, %v458
        %v463 = vsel %vm459, 1, 0
        %v464 = vsel %vm460, 1, 0
        %v465 = vsel %vm461, 1, 0
        %v466 = vsel %vm462, 1, 0
        %v467 = vcvt.s32.f32 %v463
        %v468 = vcvt.s32.f32 %v464
        %v469 = vcvt.s32.f32 %v465
        %v470 = vcvt.s32.f32 %v466
        %471 = vmatprep.subr.mxu0 0.0
        %472 = vmatpush1.msra.mxu0 %v467
        %473 = vmatprep.subr.mxu0 0.0
        %474 = vmatpush1.msra.mxu0 %v468
        %475 = vmatprep.subr.mxu0 0.0
        %476 = vmatpush1.msra.mxu0 %v469
        %477 = vmatprep.subr.mxu0 0.0
        %478 = vmatpush1.msra.mxu0 %v470
        %479 = vmatprep.subr.mxu0 0.0
        %480 = vmatpush1.msra.mxu0 0.0
        %481 = vmatprep.subr.mxu0 0.0
        %482 = vmatpush1.msra.mxu0 0.0
        %483 = vmatprep.subr.mxu0 0.0
        %484 = vmatpush1.msra.mxu0 0.0
        %485 = vmatprep.subr.mxu0 0.0
        %486 = vmatpush1.msra.mxu0 0.0
        %487 = vmatprep.subr.mxu0 0.0
        %488 = vmatpush1.msra.mxu0 0.0
        %489 = vmatprep.subr.mxu0 0.0
        %490 = vmatpush1.msra.mxu0 0.0
        %491 = vmatprep.subr.mxu0 0.0
        %492 = vmatpush1.msra.mxu0 0.0
        %493 = vmatprep.subr.mxu0 0.0
        %494 = vmatpush1.msra.mxu0 0.0
        %495 = vmatprep.subr.mxu0 0.0
        %496 = vmatpush1.msra.mxu0 0.0
        %497 = vmatprep.subr.mxu0 0.0
        %498 = vmatpush1.msra.mxu0 0.0
        %499 = vmatprep.subr.mxu0 0.0
        %500 = vmatpush1.msra.mxu0 0.0
        %501 = vmatprep.subr.mxu0 0.0
        %502 = vmatpush1.msra.mxu0 0.0
        %503 = vmatprep.subr.mxu0 0.0
        %504 = vmatpush1.msra.mxu0 0.0
        %505 = vmatprep.subr.mxu0 0.0
        %506 = vmatpush1.msra.mxu0 0.0
        %507 = vmatprep.subr.mxu0 0.0
        %508 = vmatpush1.msra.mxu0 0.0
        %509 = vmatprep.subr.mxu0 0.0
        %510 = vmatpush1.msra.mxu0 0.0
        %511 = vmatprep.subr.mxu0 0.0
        %512 = vmatpush1.msra.mxu0 0.0
        %513 = vmatprep.subr.mxu0 0.0
        %514 = vmatpush1.msra.mxu0 0.0
        %515 = vmatprep.subr.mxu0 0.0
        %516 = vmatpush1.msra.mxu0 0.0
        %517 = vmatprep.subr.mxu0 0.0
        %518 = vmatpush1.msra.mxu0 0.0
        %519 = vmatprep.subr.mxu0 0.0
        %520 = vmatpush1.msra.mxu0 0.0
        %521 = vmatprep.subr.mxu0 0.0
        %522 = vmatpush1.msra.mxu0 0.0
        %523 = vmatprep.subr.mxu0 0.0
        %524 = vmatpush1.msra.mxu0 0.0
        %525 = vmatprep.subr.mxu0 0.0
        %526 = vmatpush1.msra.mxu0 0.0
        %527 = vmatprep.subr.mxu0 0.0
        %528 = vmatpush1.msra.mxu0 0.0
        %529 = vmatprep.subr.mxu0 0.0
        %530 = vmatpush1.msra.mxu0 0.0
        %531 = vmatprep.subr.mxu0 0.0
        %532 = vmatpush1.msra.mxu0 0.0
        %533 = vmatprep.subr.mxu0 0.0
        %534 = vmatpush1.msra.mxu0 0.0
        %535 = vmatprep.mubr.f32.mxu0 0.0
        %536 = vmatmul.mubr.f32.gmra.mrb[0].mxu0 %v373
        %v537 = vpop.f32.mrb[0].mxu0
        %v538 = vadd.f32 0.0, %v537
        %v539 = vpop.f32.mrb[0].mxu0
        %540 = vdwg.mxu0
        %541 = vset.pattern.permute.xlu0 10
        %542 = vperm.xlu0 %541, %v349
        %v543 = vpop.permute.xlu0 %542
        %v545 = vmul.f32 %v543, %v538
        %v546 = vadd.f32 %v457, %v545
        %v547 = vmax.f32 %v546, 0.0
        %v548 = vpack.c.bf16 %v349, %v349
        %v549 = vpack.c.bf16 %v547, %v547
        %vm550 = vcmask 64512
        %v552 = vsel %vm550, %v548, 0
        %vm554 = vcmask 1043456
        %v556 = vsel %vm554, %v549, 0
        %558 = vmatprep.subr.bf16.mxu0 0
        %559 = vmatpush1.bf16.msra.mxu0 %v556
        %560 = vmatprep.subr.bf16.mxu0 0
        %561 = vmatpush1.bf16.msra.mxu0 0
        %562 = vmatprep.subr.bf16.mxu0 0
        %563 = vmatpush1.bf16.msra.mxu0 0
        %564 = vmatprep.subr.bf16.mxu0 0
        %565 = vmatpush1.bf16.msra.mxu0 0
        %566 = vmatprep.subr.bf16.mxu0 0
        %567 = vmatpush1.bf16.msra.mxu0 0
        %568 = vmatprep.subr.bf16.mxu0 0
        %569 = vmatpush1.bf16.msra.mxu0 0
        %570 = vmatprep.subr.bf16.mxu0 0
        %571 = vmatpush1.bf16.msra.mxu0 0
        %572 = vmatprep.subr.bf16.mxu0 0
        %573 = vmatpush1.bf16.msra.mxu0 0
        %574 = vmatprep.subr.bf16.mxu0 0
        %575 = vmatpush1.bf16.msra.mxu0 0
        %576 = vmatprep.subr.bf16.mxu0 0
        %577 = vmatpush1.bf16.msra.mxu0 0
        %578 = vmatprep.subr.bf16.mxu0 0
        %579 = vmatpush1.bf16.msra.mxu0 0
        %580 = vmatprep.subr.bf16.mxu0 0
        %581 = vmatpush1.bf16.msra.mxu0 0
        %582 = vmatprep.subr.bf16.mxu0 0
        %583 = vmatpush1.bf16.msra.mxu0 0
        %584 = vmatprep.subr.bf16.mxu0 0
        %585 = vmatpush1.bf16.msra.mxu0 0
        %586 = vmatprep.subr.bf16.mxu0 0
        %587 = vmatpush1.bf16.msra.mxu0 0
        %588 = vmatprep.subr.bf16.mxu0 0
        %589 = vmatpush1.bf16.msra.mxu0 0
        %590 = vmatprep.mubr.bf16.mxu0 0
        %591 = vmatmul.mubr.bf16.gmra.mrb[0].mxu0 %v552
        %v592 = vpop.f32.mrb[0].mxu0
        %v593 = vadd.f32 0.0, %v592
        %v594 = vpop.f32.mrb[0].mxu0
        %v595 = vpop.f32.mrb[0].mxu0
        %v596 = vpop.f32.mrb[0].mxu0
        %597 = vdwg.mxu0
        %v598 = vsel %vm278, %v593, 0.0
        %599 = vadd.xlane.f32.xlu0 %v598
        %v600 = vpop.xlane.xlu0 %599
        %v601 = vrcp.pop 32.0
        %v602 = vmul.f32 %v600, %v601
        %v603 = vsub.f32 %v593, %v602
        %v604 = vmul.f32 %v603, %v603
        %v605 = vsel %vm278, %v604, 0.0
        %606 = vadd.xlane.f32.xlu0 %v605
        %v607 = vpop.xlane.xlu0 %606
        %v608 = vmul.f32 %v607, %v601
        %v609 = vadd.f32 %v608, 1e-05
        %v610 = vrsqrt.pop %v609
        %v611 = vmul.f32 %v603, %v610
        %v612 = vld [vmem:[%s4] sm:$0x1]
        %v614 = vlaneseq
        %v615 = vshrl.u32 %v614, 7
        %v616 = vsub.s32 0, %v615
        %v617 = vrot.slane %v612, %v616
        %v619 = vmul.f32 %v611, %v617
        %v620 = vld [vmem:[%s5] sm:$0x1]
        %v622 = vlaneseq
        %v623 = vshrl.u32 %v622, 7
        %v624 = vsub.s32 0, %v623
        %v625 = vrot.slane %v620, %v624
        %v627 = vadd.f32 %v619, %v625
        %628 = vst.msk [vmem:[%s255] sm:$0xff] %vm278, %v627
        %s629 = sand.u32 %s164, 1
        %s630 = scalar_lea.sflag [#allocation3], %s629
        %s631 = sand.u32 %s164, 1
        %s632 = smul.addr %s631, 8
        %s633 = scalar_lea.vmem [#allocation2], %s632
        // Predicated region
        $region45: #{dysep_conv_atten.1} parent=43 // pred_check
          %p634 = pneg %p174
        $region46: #{dysep_conv_atten.1} parent=43 // pred_check_branch
          %636 = sbr.rel (%p634) target = $region48
        $region47: #{dysep_conv_atten.1} parent=43 // pred_region
          %s638 = ssub.s32 128, 128
          %639 = vsyncadd %s630, %s638
          %s640 = smul.addr %s20, 128
          %s641 = scalar_lea.hbm %s6, %s640
          %s643 = sshll.u32 %s633, 4
          %s644 = int_to_ptr.vmem [resolvable:$true] %s643
          %646 = dma.vmem_to_hbm [thread:$0]  %s644, 128, %s641, %s630
        $region48: #{dysep_conv_atten.1} parent=43 // pred_fallthru
          _
      $region44: #{dysep_conv_atten.1} parent=5 // pred_fallthru
        _
      %p647 = scmp.le.s32.totalorder 2, %s15
      // Predicated region
      $region49: #{dysep_conv_atten.1} parent=5 // pred_check
        %p648 = pneg %p647
      $region50: #{dysep_conv_atten.1} parent=5 // pred_check_branch
        %650 = sbr.rel (%p648) target = $region52
      $region51: #{dysep_conv_atten.1} parent=5 // pred_region
        %s651 = ssub.s32 %s15, 2
        // Predicated region
        $region53: #{dysep_conv_atten.1} parent=51 // pred_check
          %p652 = pneg %p180
        $region54: #{dysep_conv_atten.1} parent=51 // pred_check_branch
          %654 = sbr.rel (%p652) target = $region56
        $region55: #{dysep_conv_atten.1} parent=51 // pred_region
          %s655 = sand.u32 %s165, 1
          %s656 = scalar_lea.sflag [#allocation3], %s655
          %s657 = sand.u32 %s165, 1
          %s658 = smul.addr %s657, 8
          %s659 = scalar_lea.vmem [#allocation2], %s658
          %660 = dma.done %s656, 128
        $region56: #{dysep_conv_atten.1} parent=51 // pred_fallthru
          _
      $region52: #{dysep_conv_atten.1} parent=5 // pred_fallthru
        _
    $region6: #{dysep_conv_atten.1} parent=1 // loop_footer
      %s19 = sadd.s32 1, %s15
    $region7: #{dysep_conv_atten.1} parent=1 // loop_footer_branch
      %14 = sbr.rel target = $region3
    $region8: #{dysep_conv_atten.1} parent=1 // loop_exit
      _
    %661 = vsyncpa [#allocation3], 1
    %s662 = scalar_lea.sflag [#allocation3], 1
    %663 = vsyncpa %s662, 1

</llo_original>
